<compile_context>
chip_gen: v7x
topology: tpu7x:2x2x1
jax: 0.10.0
libtpu: 0.0.40
codegen_flags: <defaults>
</compile_context>

<pallas_src>
import math
import functools

import jax
import jax.numpy as jnp
from jax import lax
from jax.experimental import pallas as pl
from jax.experimental.pallas import tpu as pltpu


# --------------------------------------------------------------------------- #
# Kernel 1: fused K/V projection (once per batch element)
# --------------------------------------------------------------------------- #
def _kv_proj_kernel(y_ref, wkv_ref, bkv_ref, k_ref, v_ref, *, d_embed: int):
    y = y_ref[0].astype(wkv_ref.dtype)                       # (Lkv_pad, d_cross)
    kv = (jnp.dot(y, wkv_ref[...], preferred_element_type=jnp.float32)
          + bkv_ref[...])                                    # (Lkv_pad, 2*d_embed)
    k_ref[0] = kv[:, :d_embed].astype(k_ref.dtype)
    v_ref[0] = kv[:, d_embed:].astype(v_ref.dtype)


# --------------------------------------------------------------------------- #
# Kernel 2: Q projection + per-head attention + output projection (per q-tile)
# --------------------------------------------------------------------------- #
def _attention_kernel(x_ref, k_ref, v_ref,
                      wq_ref, bq_ref, wo_ref, bo_ref,
                      o_ref, attn_ref,
                      *, n_heads: int, d_head: int, lkv: int, lkv_pad: int,
                      exp_dtype):
    x = x_ref[0].astype(wq_ref.dtype)                        # (TQ, d_embed)
    k = k_ref[0]                                             # (Lkv_pad, d_embed)
    v = v_ref[0]                                             # (Lkv_pad, d_embed)

    # Q projection.  The 1/sqrt(d_head) scale is already folded into wq/bq.
    q = (jnp.dot(x, wq_ref[...], preferred_element_type=jnp.float32)
         + bq_ref[...]).astype(k.dtype)                      # (TQ, d_embed)
    tq = q.shape[0]

    # Additive mask for the padded key columns (hoisted out of the head loop).
    if lkv_pad > lkv:
        col = lax.broadcasted_iota(jnp.int32, (tq, lkv_pad), 1)
        score_bias = jnp.where(col < lkv, 0.0, -1e30).astype(jnp.float32)
    else:
        score_bias = None

    for h in range(n_heads):                                 # static unroll
        lo, hi = h * d_head, (h + 1) * d_head
        qh = q[:, lo:hi]                                     # (TQ,      d_head)
        kh = k[:, lo:hi]                                     # (Lkv_pad, d_head)
        vh = v[:, lo:hi]                                     # (Lkv_pad, d_head)

        # Scores: contract last dims of both operands -> no explicit kh.T.
        s = lax.dot_general(qh, kh, (((1,), (1,)), ((), ())),
                            preferred_element_type=jnp.float32)  # (TQ, Lkv_pad)
        if score_bias is not None:
            s = s + score_bias                               # pad cols -> -1e30

        m = jnp.max(s, axis=-1, keepdims=True)
        p = jnp.exp((s - m).astype(exp_dtype))               # unnormalized probs
        l = jnp.sum(p, axis=-1, keepdims=True, dtype=jnp.float32)   # (TQ, 1)

        p_mx = p if p.dtype == vh.dtype else p.astype(vh.dtype)
        oh = jnp.dot(p_mx, vh, preferred_element_type=jnp.float32)  # (TQ, d_head)
        # Deferred normalization on the small (TQ, d_head) tile; EUP reciprocal.
        attn_ref[:, lo:hi] = (oh * pl.reciprocal(l, approx=True)).astype(attn_ref.dtype)

    attn = attn_ref[...]
    if attn.dtype != wo_ref.dtype:
        attn = attn.astype(wo_ref.dtype)
    out = jnp.dot(attn, wo_ref[...], preferred_element_type=jnp.float32) + bo_ref[...]
    o_ref[0] = out.astype(o_ref.dtype)


# --------------------------------------------------------------------------- #
# Wrapper
# --------------------------------------------------------------------------- #
def cross_attention(x, y, params, *, n_heads: int, tq=None,
                    param_dtype=jnp.bfloat16,       # bf16 MXU operands by default
                    exp_dtype=jnp.float32,          # set jnp.bfloat16 on v6e/v7x
                    vmem_limit_bytes=None):
    B, Lq, d_embed = x.shape
    By, Lkv, d_cross = y.shape
    assert By == B and d_embed % n_heads == 0
    d_head = d_embed // n_heads

    # Fold the attention scale into the Q projection (zero runtime cost).
    # Note: with bf16 params the scale is folded before the cast; rounding differs
    # very slightly from scaling f32 scores (documented, tolerance accounts for it).
    scale = 1.0 / math.sqrt(d_head)
    wq = params["wq"] * scale
    bq = params["bq"] * scale
    wk, bk = params["wk"], params["bk"]
    wv, bv = params["wv"], params["bv"]
    wo, bo = params["wo"], params["bo"]
    if param_dtype is not None:
        wq, bq, wk, bk, wv, bv, wo, bo = tuple(
            t.astype(param_dtype) for t in (wq, bq, wk, bk, wv, bv, wo, bo))
    w_dtype = wq.dtype
    kv_dtype = param_dtype if param_dtype is not None else x.dtype

    # Fused K|V projection weights: one matmul instead of two.
    wkv = jnp.concatenate([wk, wv], axis=1)          # (d_cross, 2*d_embed)
    bkv = jnp.concatenate([bk, bv], axis=1)          # (1, 2*d_embed)

    # Pad Lkv to a lane-dense multiple of 128; pad columns are masked to -1e30
    # inside kernel 2 before exp (zero-padding K alone is NOT correctness-neutral).
    lkv_pad = ((Lkv + 127) // 128) * 128
    y_in = y if lkv_pad == Lkv else jnp.pad(y, ((0, 0), (0, lkv_pad - Lkv), (0, 0)))

    # Query tile: prefer 256 (spill / v7x-VMEM headroom); guarantee >=2 grid steps
    # per batch when B == 1 so both v7x TensorCores get work and the pipeliner has
    # steps to hide the x-tile DMA.
    if tq is None:
        tq = Lq
        for cand in (256, 512, 128):
            if Lq % cand == 0:
                tq = cand
                break
        if B == 1 and tq == Lq and Lq >= 16:
            half = Lq // 2
            if Lq % half == 0 and half % 8 == 0:
                tq = half
    assert Lq % tq == 0, "tq must divide Lq"
    assert tq == Lq or tq % 8 == 0, "partial q-tile must be a multiple of 8"

    # Grid-invariant constants: whole array resident in VMEM (single buffer).
    vmem_full = pl.BlockSpec(memory_space=pltpu.MemorySpace.VMEM)

    extra = {}
    if vmem_limit_bytes is not None:
        extra["vmem_limit_bytes"] = vmem_limit_bytes

    def nbytes(shape, dtype):
        return int(math.prod(shape)) * jnp.dtype(dtype).itemsize

    # ---- kernel 1: fused K/V projection ---------------------------------- #
    cost_kv = pl.CostEstimate(
        flops=2 * B * lkv_pad * d_cross * (2 * d_embed),
        transcendentals=0,
        bytes_accessed=(nbytes((B, lkv_pad, d_cross), y_in.dtype)
                        + nbytes((d_cross, 2 * d_embed), w_dtype)
                        + nbytes((1, 2 * d_embed), w_dtype)
                        + 2 * nbytes((B, lkv_pad, d_embed), kv_dtype)))

    k_proj, v_proj = pl.pallas_call(
        functools.partial(_kv_proj_kernel, d_embed=d_embed),
        out_shape=(jax.ShapeDtypeStruct((B, lkv_pad, d_embed), kv_dtype),
                   jax.ShapeDtypeStruct((B, lkv_pad, d_embed), kv_dtype)),
        grid=(B,),
        in_specs=[
            pl.BlockSpec((1, lkv_pad, d_cross), lambda b: (b, 0, 0)),   # y (padded)
            vmem_full, vmem_full,                                       # Wk|Wv, bk|bv
        ],
        out_specs=(pl.BlockSpec((1, lkv_pad, d_embed), lambda b: (b, 0, 0)),
                   pl.BlockSpec((1, lkv_pad, d_embed), lambda b: (b, 0, 0))),
        compiler_params=pltpu.CompilerParams(
            dimension_semantics=("parallel",), **extra),
        cost_estimate=cost_kv,
    )(y_in, wkv, bkv)

    # ---- kernel 2: attention + output projection over (batch, q-tile) ---- #
    cost_attn = pl.CostEstimate(
        flops=2 * B * Lq * (2 * d_embed * d_embed + 2 * lkv_pad * d_embed),
        transcendentals=B * Lq * lkv_pad + B * Lq * n_heads,
        bytes_accessed=(nbytes((B, Lq, d_embed), x.dtype)
                        + 2 * nbytes((B, lkv_pad, d_embed), kv_dtype)
                        + 2 * nbytes((d_embed, d_embed), w_dtype)
                        + 2 * nbytes((1, d_embed), w_dtype)
                        + nbytes((B, Lq, d_embed), x.dtype)))

    kernel = functools.partial(_attention_kernel, n_heads=n_heads, d_head=d_head,
                               lkv=Lkv, lkv_pad=lkv_pad, exp_dtype=exp_dtype)
    return pl.pallas_call(
        kernel,
        out_shape=jax.ShapeDtypeStruct((B, Lq, d_embed), x.dtype),
        grid=(B, Lq // tq),
        in_specs=[
            pl.BlockSpec((1, tq, d_embed), lambda b, i: (b, i, 0)),       # x tile
            pl.BlockSpec((1, lkv_pad, d_embed), lambda b, i: (b, 0, 0)),  # K (re-fetched only when b changes)
            pl.BlockSpec((1, lkv_pad, d_embed), lambda b, i: (b, 0, 0)),  # V
            vmem_full, vmem_full,                                         # Wq (scaled), bq (scaled)
            vmem_full, vmem_full,                                         # Wo, bo
        ],
        out_specs=pl.BlockSpec((1, tq, d_embed), lambda b, i: (b, i, 0)),
        scratch_shapes=[pltpu.VMEM((tq, d_embed), kv_dtype)],             # lane-dense head outputs
        compiler_params=pltpu.CompilerParams(
            dimension_semantics=("parallel", "parallel"), **extra),
        cost_estimate=cost_attn,
    )(x, k_proj, v_proj, wq, bq, wo, bo)


# --------------------------------------------------------------------------- #
# Plain-JAX reference (mirrors the PyTorch forward) and test harness
# --------------------------------------------------------------------------- #
def cross_attention_reference(x, y, params, *, n_heads: int):
    B, Lq, d_embed = x.shape
    Lkv = y.shape[1]
    d_head = d_embed // n_heads

    q = x @ params["wq"] + params["bq"]
    k = y @ params["wk"] + params["bk"]
    v = y @ params["wv"] + params["bv"]

    q = q.reshape(B, Lq, n_heads, d_head).transpose(0, 2, 1, 3)
    k = k.reshape(B, Lkv, n_heads, d_head).transpose(0, 2, 1, 3)
    v = v.reshape(B, Lkv, n_heads, d_head).transpose(0, 2, 1, 3)

    w = jnp.einsum("bhqd,bhkd->bhqk", q, k) / math.sqrt(d_head)
    w = jax.nn.softmax(w, axis=-1)
    o = jnp.einsum("bhqk,bhkd->bhqd", w, v)
    o = o.transpose(0, 2, 1, 3).reshape(B, Lq, d_embed)
    return o @ params["wo"] + params["bo"]


def init_params(key, d_embed, d_cross):
    """Deterministic synthetic Linear params, stored as (in_features, out_features)."""
    ks = jax.random.split(key, 8)
    s_e = 1.0 / math.sqrt(d_embed)
    s_c = 1.0 / math.sqrt(d_cross)
    return {
        "wq": jax.random.normal(ks[0], (d_embed, d_embed), jnp.float32) * s_e,
        "bq": jax.random.normal(ks[1], (1, d_embed), jnp.float32) * 0.02,
        "wk": jax.random.normal(ks[2], (d_cross, d_embed), jnp.float32) * s_c,
        "bk": jax.random.normal(ks[3], (1, d_embed), jnp.float32) * 0.02,
        "wv": jax.random.normal(ks[4], (d_cross, d_embed), jnp.float32) * s_c,
        "bv": jax.random.normal(ks[5], (1, d_embed), jnp.float32) * 0.02,
        "wo": jax.random.normal(ks[6], (d_embed, d_embed), jnp.float32) * s_e,
        "bo": jax.random.normal(ks[7], (1, d_embed), jnp.float32) * 0.02,
    }


if __name__ == "__main__":
    B = 2          # batch
    Lq = 16        # query sequence length (flattened latent tokens)
    Lkv = 8        # cross (context) sequence length  -> padded to 128 internally
    d_embed = 32   # query embedding dim
    d_cross = 24   # context embedding dim
    n_heads = 4    # -> d_head = 8

    key = jax.random.PRNGKey(0)
    kx, ky, kp = jax.random.split(key, 3)

    x = jax.random.normal(kx, (B, Lq, d_embed), jnp.float32)
    y = jax.random.normal(ky, (B, Lkv, d_cross), jnp.float32)
    params = init_params(kp, d_embed, d_cross)

    ref = cross_attention_reference(x, y, params, n_heads=n_heads)

    # Production path: bf16 MXU operands (default), f32 accumulation.
    out_bf16 = jax.block_until_ready(cross_attention(x, y, params, n_heads=n_heads))
    assert out_bf16.shape == (B, Lq, d_embed)
    # Loose tolerance: bf16 weights/K/V/probabilities + EUP approximate reciprocal.
    assert jnp.allclose(out_bf16, ref, atol=1e-1, rtol=1e-1), "bf16 path mismatch"

    # Full-precision path for a tight correctness check of the kernel structure
    # (padding/masking, fused KV, deferred normalization).
    out_f32 = jax.block_until_ready(
        cross_attention(x, y, params, n_heads=n_heads, param_dtype=jnp.float32))
    # Tolerance slightly loose because of pl.reciprocal(..., approx=True).
    assert jnp.allclose(out_f32, ref, atol=2e-2, rtol=2e-2), "f32 path mismatch"

    print("KERNEL_OK")
</pallas_src>

<mosaic_0001>
module attributes {stable_mosaic.version = 11 : i64} {
  func.func @_kv_proj_kernel(%arg0: i32, %arg1: memref<1x128x24xf32, #tpu.memory_space<vmem>>, %arg2: memref<24x64xbf16, #tpu.memory_space<vmem>>, %arg3: memref<1x64xbf16, #tpu.memory_space<vmem>>, %arg4: memref<1x128x32xbf16, #tpu.memory_space<vmem>>, %arg5: memref<1x128x32xbf16, #tpu.memory_space<vmem>>) attributes {dimension_semantics = [#tpu.dimension_semantics<parallel>], iteration_bounds = array<i64: 2>, scalar_prefetch = 0 : i64, scratch_operands = 0 : i64, tpu.core_type = #tpu.core_type<tc>, window_params = [{transform_indices = @transform_0, window_bounds = array<i64: 1, 128, 24>}, {pipeline_mode = #tpu.pipeline_mode<synchronous>, transform_indices = @transform_1, window_bounds = array<i64: 24, 64>}, {pipeline_mode = #tpu.pipeline_mode<synchronous>, transform_indices = @transform_2, window_bounds = array<i64: 1, 64>}, {transform_indices = @transform_3, window_bounds = array<i64: 1, 128, 32>}, {transform_indices = @transform_4, window_bounds = array<i64: 1, 128, 32>}]} {
    %c0 = arith.constant 0 : index
    %c0_0 = arith.constant 0 : index
    %c0_1 = arith.constant 0 : index
    %0 = vector.load %arg1[%c0, %c0_0, %c0_1] : memref<1x128x24xf32, #tpu.memory_space<vmem>>, vector<1x128x24xf32>
    %1 = vector.shape_cast %0 : vector<1x128x24xf32> to vector<128x24xf32>
    %2 = arith.truncf %1 : vector<128x24xf32> to vector<128x24xbf16>
    %c0_2 = arith.constant 0 : index
    %c0_3 = arith.constant 0 : index
    %3 = vector.load %arg2[%c0_2, %c0_3] : memref<24x64xbf16, #tpu.memory_space<vmem>>, vector<24x64xbf16>
    %cst = arith.constant dense<0.000000e+00> : vector<128x64xf32>
    %4 = tpu.matmul %2, %3, %cst {dimension_numbers = #tpu.dot_dimension_numbers<[1], [0], [0], [1], [0, 0, 1, 1], [], []>} : vector<128x24xbf16>, vector<24x64xbf16>, vector<128x64xf32> -> vector<128x64xf32>
    %c0_4 = arith.constant 0 : index
    %c0_5 = arith.constant 0 : index
    %5 = vector.load %arg3[%c0_4, %c0_5] : memref<1x64xbf16, #tpu.memory_space<vmem>>, vector<1x64xbf16>
    %6 = arith.extf %5 : vector<1x64xbf16> to vector<1x64xf32>
    %7 = vector.broadcast %6 : vector<1x64xf32> to vector<128x64xf32>
    %8 = arith.addf %4, %7 : vector<128x64xf32>
    %9 = vector.extract_strided_slice %8 {offsets = [0, 0], sizes = [128, 32], strides = [1, 1]} : vector<128x64xf32> to vector<128x32xf32>
    %10 = arith.truncf %9 : vector<128x32xf32> to vector<128x32xbf16>
    %c0_6 = arith.constant 0 : index
    %c0_7 = arith.constant 0 : index
    %c0_8 = arith.constant 0 : index
    %11 = vector.load %arg4[%c0_6, %c0_7, %c0_8] : memref<1x128x32xbf16, #tpu.memory_space<vmem>>, vector<1x128x32xbf16>
    %12 = vector.shape_cast %11 : vector<1x128x32xbf16> to vector<128x32xbf16>
    %13 = vector.shape_cast %10 : vector<128x32xbf16> to vector<1x128x32xbf16>
    tpu.vector_store %arg4[%c0_6, %c0_7, %c0_8], %13 {strides = array<i32>} : memref<1x128x32xbf16, #tpu.memory_space<vmem>>, vector<1x128x32xbf16>,
    %14 = vector.extract_strided_slice %8 {offsets = [0, 32], sizes = [128, 32], strides = [1, 1]} : vector<128x64xf32> to vector<128x32xf32>
    %15 = arith.truncf %14 : vector<128x32xf32> to vector<128x32xbf16>
    %c0_9 = arith.constant 0 : index
    %c0_10 = arith.constant 0 : index
    %c0_11 = arith.constant 0 : index
    %16 = vector.load %arg5[%c0_9, %c0_10, %c0_11] : memref<1x128x32xbf16, #tpu.memory_space<vmem>>, vector<1x128x32xbf16>
    %17 = vector.shape_cast %16 : vector<1x128x32xbf16> to vector<128x32xbf16>
    %18 = vector.shape_cast %15 : vector<128x32xbf16> to vector<1x128x32xbf16>
    tpu.vector_store %arg5[%c0_9, %c0_10, %c0_11], %18 {strides = array<i32>} : memref<1x128x32xbf16, #tpu.memory_space<vmem>>, vector<1x128x32xbf16>,
    return
  }
  func.func @transform_0(%arg0: i32) -> (i32, i32, i32) {
    %c0_i32 = arith.constant 0 : i32
    %c0_i32_0 = arith.constant 0 : i32
    %c0_i32_1 = arith.constant 0 : i32
    return %arg0, %c0_i32, %c0_i32_0 : i32, i32, i32
  }
  func.func @transform_1(%arg0: i32) -> (i32, i32) {
    %c0_i32 = arith.constant 0 : i32
    %c0_i32_0 = arith.constant 0 : i32
    %c0_i32_1 = arith.constant 0 : i32
    return %c0_i32, %c0_i32_0 : i32, i32
  }
  func.func @transform_2(%arg0: i32) -> (i32, i32) {
    %c0_i32 = arith.constant 0 : i32
    %c0_i32_0 = arith.constant 0 : i32
    %c0_i32_1 = arith.constant 0 : i32
    return %c0_i32, %c0_i32_0 : i32, i32
  }
  func.func @transform_3(%arg0: i32) -> (i32, i32, i32) {
    %c0_i32 = arith.constant 0 : i32
    %c0_i32_0 = arith.constant 0 : i32
    %c0_i32_1 = arith.constant 0 : i32
    return %arg0, %c0_i32, %c0_i32_0 : i32, i32, i32
  }
  func.func @transform_4(%arg0: i32) -> (i32, i32, i32) {
    %c0_i32 = arith.constant 0 : i32
    %c0_i32_0 = arith.constant 0 : i32
    %c0_i32_1 = arith.constant 0 : i32
    return %arg0, %c0_i32, %c0_i32_0 : i32, i32, i32
  }
}

</mosaic_0001>

<llo_original>
// kernel: tpu_custom_call.1
$region0: #{tpu_custom_call.1}
  #allocation0 [shape = 'u32[]', space=smem, size = 0x4, offset = 0x4, fixed_abs, tag = 'smem constant byte address 0x4 - core index']
  #allocation1 [shape = 'u32[144,128]{1,0:T(1,128)}', space=vmem, size = 0x12000, scoped, tag = 'internal scratch']
  %s0 = inlined_call_operand.vmem [shape: f32[2,128,24], index: 0, kind: input, shape index: {}]
  %s1 = inlined_call_operand.vmem [shape: bf16[24,64], index: 1, kind: input, shape index: {}]
  %s2 = inlined_call_operand.vmem [shape: bf16[1,64], index: 2, kind: input, shape index: {}]
  %s3 = inlined_call_operand.vmem [shape: bf16[2,128,32], index: 3, kind: output, shape index: {0}]
  %s4 = inlined_call_operand.vmem [shape: bf16[2,128,32], index: 4, kind: output, shape index: {1}]
  %5 = xla_tuple %s3, %s4
  %s6 = sld [smem:[#allocation0]]
  $region53: #{tpu_custom_call.1} parent=0
    _
  %s8 = ssub.s32 1, %s6
  %s9 = scalar_select 0, %s8, %s6
  loop: start=0, step=1, limit=4
  $region2: #{tpu_custom_call.1} parent=0 // loop_pre_header
    _
  $region3: #{tpu_custom_call.1} parent=0 // loop_header
    %s11 = sphi 0, %s15
    %p12 = scmp.ge.s32.totalorder %s11, 4
    %s21 = sphi 0, %s23
    %s24 = sphi 0, %s21
    %s25 = sphi 0, %s24
    %s41 = sphi 0, %s25
    %s45 = sphi 0, %s45
    %s47 = sphi 0, %s45
    %s48 = sphi 0, %s47
    %s62 = sphi 0, %s48
    %s66 = sphi 0, %s66
    %s68 = sphi 0, %s66
    %s69 = sphi 0, %s68
    %s83 = sphi 0, %s69
    %s89 = sphi 0, %s91
    %s92 = sphi 0, %s89
    %s93 = sphi 0, %s92
    %s109 = sphi 0, %s93
    %s115 = sphi 0, %s117
    %s118 = sphi 0, %s115
    %s119 = sphi 0, %s118
    %s135 = sphi 0, %s119
  $region4: #{tpu_custom_call.1} parent=0 // loop_header_branch
    %14 = sbr.rel (%p12) target = $region8
  $region5: #{tpu_custom_call.1} parent=0 // loop_body
    %s16 = ssub.s32 %s11, 1
    %s17 = ssub.s32 %s11, 2
    %s18 = sadd.s32 %s11, 1
    %s19 = ssub.s32 %s11, %s18
    %p20 = scmp.eq.s32.totalorder %s19, 0
    %s22 = sadd.s32 %s21, 1
    %s23 = scalar_select %p20, %s21, %s22
    %p26 = pneg %p20
    %p27 = scmp.eq.s32.totalorder %s11, 1
    %p28 = por %p26, %p27
    %p29 = scmp.ne.s32.totalorder %s21, %s24
    %p30 = scmp.eq.s32.totalorder %s11, 0
    %p31 = por %p29, %p30
    %p32 = scmp.ne.s32.totalorder %s21, %s24
    %p33 = scmp.eq.s32.totalorder %s16, 1
    %p34 = por %p32, %p33
    %p35 = scmp.ne.s32.totalorder %s24, %s25
    %p36 = scmp.eq.s32.totalorder %s16, 0
    %p37 = por %p35, %p36
    %p38 = scmp.ne.s32.totalorder %s24, %s25
    %p39 = scmp.eq.s32.totalorder %s17, 1
    %p40 = por %p38, %p39
    %p42 = scmp.ne.s32.totalorder %s25, %s41
    %p43 = scmp.eq.s32.totalorder %s17, 0
    %p44 = por %p42, %p43
    %s46 = sadd.s32 %s45, 1
    %p49 = scmp.eq.s32.totalorder %s11, 1
    %p50 = scmp.ne.s32.totalorder %s45, %s47
    %p51 = scmp.eq.s32.totalorder %s11, 0
    %p52 = por %p50, %p51
    %p53 = scmp.ne.s32.totalorder %s45, %s47
    %p54 = scmp.eq.s32.totalorder %s16, 1
    %p55 = por %p53, %p54
    %p56 = scmp.ne.s32.totalorder %s47, %s48
    %p57 = scmp.eq.s32.totalorder %s16, 0
    %p58 = por %p56, %p57
    %p59 = scmp.ne.s32.totalorder %s47, %s48
    %p60 = scmp.eq.s32.totalorder %s17, 1
    %p61 = por %p59, %p60
    %p63 = scmp.ne.s32.totalorder %s48, %s62
    %p64 = scmp.eq.s32.totalorder %s17, 0
    %p65 = por %p63, %p64
    %s67 = sadd.s32 %s66, 1
    %p70 = scmp.eq.s32.totalorder %s11, 1
    %p71 = scmp.ne.s32.totalorder %s66, %s68
    %p72 = scmp.eq.s32.totalorder %s11, 0
    %p73 = por %p71, %p72
    %p74 = scmp.ne.s32.totalorder %s66, %s68
    %p75 = scmp.eq.s32.totalorder %s16, 1
    %p76 = por %p74, %p75
    %p77 = scmp.ne.s32.totalorder %s68, %s69
    %p78 = scmp.eq.s32.totalorder %s16, 0
    %p79 = por %p77, %p78
    %p80 = scmp.ne.s32.totalorder %s68, %s69
    %p81 = scmp.eq.s32.totalorder %s17, 1
    %p82 = por %p80, %p81
    %p84 = scmp.ne.s32.totalorder %s69, %s83
    %p85 = scmp.eq.s32.totalorder %s17, 0
    %p86 = por %p84, %p85
    %s87 = ssub.s32 %s11, %s18
    %p88 = scmp.eq.s32.totalorder %s87, 0
    %s90 = sadd.s32 %s89, 1
    %s91 = scalar_select %p88, %s89, %s90
    %p94 = pneg %p88
    %p95 = scmp.eq.s32.totalorder %s11, 1
    %p96 = por %p94, %p95
    %p97 = scmp.ne.s32.totalorder %s89, %s92
    %p98 = scmp.eq.s32.totalorder %s11, 0
    %p99 = por %p97, %p98
    %p100 = scmp.ne.s32.totalorder %s89, %s92
    %p101 = scmp.eq.s32.totalorder %s16, 1
    %p102 = por %p100, %p101
    %p103 = scmp.ne.s32.totalorder %s92, %s93
    %p104 = scmp.eq.s32.totalorder %s16, 0
    %p105 = por %p103, %p104
    %p106 = scmp.ne.s32.totalorder %s92, %s93
    %p107 = scmp.eq.s32.totalorder %s17, 1
    %p108 = por %p106, %p107
    %p110 = scmp.ne.s32.totalorder %s93, %s109
    %p111 = scmp.eq.s32.totalorder %s17, 0
    %p112 = por %p110, %p111
    %s113 = ssub.s32 %s11, %s18
    %p114 = scmp.eq.s32.totalorder %s113, 0
    %s116 = sadd.s32 %s115, 1
    %s117 = scalar_select %p114, %s115, %s116
    %p120 = pneg %p114
    %p121 = scmp.eq.s32.totalorder %s11, 1
    %p122 = por %p120, %p121
    %p123 = scmp.ne.s32.totalorder %s115, %s118
    %p124 = scmp.eq.s32.totalorder %s11, 0
    %p125 = por %p123, %p124
    %p126 = scmp.ne.s32.totalorder %s115, %s118
    %p127 = scmp.eq.s32.totalorder %s16, 1
    %p128 = por %p126, %p127
    %p129 = scmp.ne.s32.totalorder %s118, %s119
    %p130 = scmp.eq.s32.totalorder %s16, 0
    %p131 = por %p129, %p130
    %p132 = scmp.ne.s32.totalorder %s118, %s119
    %p133 = scmp.eq.s32.totalorder %s17, 1
    %p134 = por %p132, %p133
    %p136 = scmp.ne.s32.totalorder %s119, %s135
    %p137 = scmp.eq.s32.totalorder %s17, 0
    %p138 = por %p136, %p137
    %p139 = scmp.le.s32.totalorder 1, %s11
    %p140 = scmp.lt.s32.totalorder %s11, 3
    %p141 = pnand %p139, %p140
    %p142 = pneg %p141
    // Predicated region
    $region9: #{tpu_custom_call.1} parent=5 // pred_check
      _
    $region10: #{tpu_custom_call.1} parent=5 // pred_check_branch
      %144 = sbr.rel (%p141) target = $region12
    $region11: #{tpu_custom_call.1} parent=5 // pred_region
      %s145 = ssub.s32 %s11, 1
      // Predicated region
      $region13: #{tpu_custom_call.1} parent=11 // pred_check
        %p146 = pneg %p58
      $region14: #{tpu_custom_call.1} parent=11 // pred_check_branch
        %148 = sbr.rel (%p146) target = $region16
      $region15: #{tpu_custom_call.1} parent=11 // pred_region
        _
      $region16: #{tpu_custom_call.1} parent=11 // pred_fallthru
        _
      // Predicated region
      $region17: #{tpu_custom_call.1} parent=11 // pred_check
        %p149 = pneg %p79
      $region18: #{tpu_custom_call.1} parent=11 // pred_check_branch
        %151 = sbr.rel (%p149) target = $region20
      $region19: #{tpu_custom_call.1} parent=11 // pred_region
        _
      $region20: #{tpu_custom_call.1} parent=11 // pred_fallthru
        _
    $region12: #{tpu_custom_call.1} parent=5 // pred_fallthru
      _
    %p152 = scmp.lt.s32.totalorder %s11, 2
    // Predicated region
    $region21: #{tpu_custom_call.1} parent=5 // pred_check
      %p153 = pneg %p152
    $region22: #{tpu_custom_call.1} parent=5 // pred_check_branch
      %155 = sbr.rel (%p153) target = $region24
    $region23: #{tpu_custom_call.1} parent=5 // pred_region
      // Predicated region
      $region25: #{tpu_custom_call.1} parent=23 // pred_check
        %p156 = pneg %p31
      $region26: #{tpu_custom_call.1} parent=23 // pred_check_branch
        %158 = sbr.rel (%p156) target = $region28
      $region27: #{tpu_custom_call.1} parent=23 // pred_region
        %p159 = scmp.lt.s32.totalorder %s11, 1
        %s160 = scalar_select %p159, %s11, 1
        %s161 = smul.addr %s160, 16
        %s162 = smul.addr %s161, 8
        %s163 = scalar_lea.vmem %s0, %s162
      $region28: #{tpu_custom_call.1} parent=23 // pred_fallthru
        _
    $region24: #{tpu_custom_call.1} parent=5 // pred_fallthru
      _
    %p164 = scmp.le.s32.totalorder 1, %s11
    %p165 = scmp.lt.s32.totalorder %s11, 3
    %p166 = pnand %p164, %p165
    %p167 = pneg %p166
    // Predicated region
    $region29: #{tpu_custom_call.1} parent=5 // pred_check
      _
    $region30: #{tpu_custom_call.1} parent=5 // pred_check_branch
      %169 = sbr.rel (%p166) target = $region32
    $region31: #{tpu_custom_call.1} parent=5 // pred_region
      %s170 = ssub.s32 %s11, 1
      %p171 = scmp.lt.s32.totalorder %s16, 1
      %s172 = scalar_select %p171, %s16, 1
      %s173 = smul.addr %s172, 16
      %s174 = smul.addr %s173, 8
      %s175 = scalar_lea.vmem %s0, %s174
      %p176 = pneg %p37
      %p177 = pneg %p34
      %p178 = pneg %p58
      %p179 = pneg %p55
      %p180 = pneg %p79
      %p181 = pneg %p76
      %p182 = pneg %p105
      %p183 = pneg %p102
      %p184 = scmp.lt.s32.totalorder %s16, 1
      %s185 = scalar_select %p184, %s16, 1
      %s186 = smul.addr %s185, 16
      %s187 = smul.addr %s186, 4
      %s188 = scalar_lea.vmem %s3, %s187
      %p189 = pneg %p131
      %p190 = pneg %p128
      %p191 = scmp.lt.s32.totalorder %s16, 1
      %s192 = scalar_select %p191, %s16, 1
      %s193 = smul.addr %s192, 16
      %s194 = smul.addr %s193, 4
      %s195 = scalar_lea.vmem %s4, %s194
      %p196 = scmp.lt.s32.totalorder %s16, 1
      %s197 = scalar_select %p196, %s16, 1
      %s198 = smul.addr %s197, 16
      %s199 = smul.addr %s198, 8
      %s200 = scalar_lea.vmem %s0, %s199
      %p201 = scmp.lt.s32.totalorder %s16, 1
      %s202 = scalar_select %p201, %s16, 1
      %s203 = smul.addr %s202, 16
      %s204 = smul.addr %s203, 4
      %s205 = scalar_lea.vmem %s3, %s204
      %p206 = scmp.lt.s32.totalorder %s16, 1
      %s207 = scalar_select %p206, %s16, 1
      %s208 = smul.addr %s207, 16
      %s209 = smul.addr %s208, 4
      %s210 = scalar_lea.vmem %s4, %s209
      %v212 = vld [vmem:[%s200] sm:$0xff]
      %v213 = vld [vmem:[%s200 + $0x8] sm:$0xff]
      %v214 = vld [vmem:[%s200 + $0x10] sm:$0xff]
      %v215 = vld [vmem:[%s200 + $0x18] sm:$0xff]
      %v216 = vld [vmem:[%s200 + $0x20] sm:$0xff]
      %v217 = vld [vmem:[%s200 + $0x28] sm:$0xff]
      %v218 = vld [vmem:[%s200 + $0x30] sm:$0xff]
      %v219 = vld [vmem:[%s200 + $0x38] sm:$0xff]
      %v220 = vld [vmem:[%s200 + $0x40] sm:$0xff]
      %v221 = vld [vmem:[%s200 + $0x48] sm:$0xff]
      %v222 = vld [vmem:[%s200 + $0x50] sm:$0xff]
      %v223 = vld [vmem:[%s200 + $0x58] sm:$0xff]
      %v224 = vld [vmem:[%s200 + $0x60] sm:$0xff]
      %v225 = vld [vmem:[%s200 + $0x68] sm:$0xff]
      %v226 = vld [vmem:[%s200 + $0x70] sm:$0xff]
      %v227 = vld [vmem:[%s200 + $0x78] sm:$0xff]
      %v228 = vpack.c.bf16 %v213, %v212
      %v229 = vpack.c.bf16 %v215, %v214
      %v230 = vpack.c.bf16 %v217, %v216
      %v231 = vpack.c.bf16 %v219, %v218
      %v232 = vpack.c.bf16 %v221, %v220
      %v233 = vpack.c.bf16 %v223, %v222
      %v234 = vpack.c.bf16 %v225, %v224
      %v235 = vpack.c.bf16 %v227, %v226
      %v236 = vld [vmem:[%s1] sm:$0xf]
      %v237 = vld [vmem:[%s1 + $0x4] sm:$0xf]
      %v238 = vld [vmem:[%s1 + $0x8] sm:$0xf]
      %v239 = vld [vmem:[%s2] sm:$0x1]
      %v240 = vunpack.c.l.bf16 %v239
      %v241 = vlaneseq
      %v242 = vshrl.u32 %v241, 7
      %v243 = vsub.s32 0, %v242
      %v244 = vrot.slane %v240, %v243
      %v248 = vunpack.c.l.b16 %v236
      %v249 = vunpack.c.l.b16 %v237
      %v250 = vunpack.c.l.b16 %v238
      %v251 = vpack.c.b16 %v249, %v248
      %v252 = vpack.c.b16 %v250, %v250
      %vm254 = vcmask 195584
      %v256 = vsel %vm254, %v228, 0
      %v259 = vsel %vm254, %v229, 0
      %v262 = vsel %vm254, %v230, 0
      %v265 = vsel %vm254, %v231, 0
      %v268 = vsel %vm254, %v232, 0
      %v271 = vsel %vm254, %v233, 0
      %v274 = vsel %vm254, %v234, 0
      %v277 = vsel %vm254, %v235, 0
      %vm279 = vcmask 1043456
      %v281 = vsel %vm279, %v252, 0
      %283 = vmatprep.subr.bf16.mxu0 0
      %284 = vmatpush1.bf16.msra.mxu0 %v251
      %285 = vmatprep.subr.bf16.mxu0 0
      %286 = vmatpush1.bf16.msra.mxu0 %v281
      %287 = vmatprep.subr.bf16.mxu0 0
      %288 = vmatpush1.bf16.msra.mxu0 0
      %289 = vmatprep.subr.bf16.mxu0 0
      %290 = vmatpush1.bf16.msra.mxu0 0
      %291 = vmatprep.subr.bf16.mxu0 0
      %292 = vmatpush1.bf16.msra.mxu0 0
      %293 = vmatprep.subr.bf16.mxu0 0
      %294 = vmatpush1.bf16.msra.mxu0 0
      %295 = vmatprep.subr.bf16.mxu0 0
      %296 = vmatpush1.bf16.msra.mxu0 0
      %297 = vmatprep.subr.bf16.mxu0 0
      %298 = vmatpush1.bf16.msra.mxu0 0
      %299 = vmatprep.subr.bf16.mxu0 0
      %300 = vmatpush1.bf16.msra.mxu0 0
      %301 = vmatprep.subr.bf16.mxu0 0
      %302 = vmatpush1.bf16.msra.mxu0 0
      %303 = vmatprep.subr.bf16.mxu0 0
      %304 = vmatpush1.bf16.msra.mxu0 0
      %305 = vmatprep.subr.bf16.mxu0 0
      %306 = vmatpush1.bf16.msra.mxu0 0
      %307 = vmatprep.subr.bf16.mxu0 0
      %308 = vmatpush1.bf16.msra.mxu0 0
      %309 = vmatprep.subr.bf16.mxu0 0
      %310 = vmatpush1.bf16.msra.mxu0 0
      %311 = vmatprep.subr.bf16.mxu0 0
      %312 = vmatpush1.bf16.msra.mxu0 0
      %313 = vmatprep.subr.bf16.mxu0 0
      %314 = vmatpush1.bf16.msra.mxu0 0
      %315 = vmatprep.mubr.bf16.mxu0 0
      %316 = vmatmul.mubr.bf16.gmra.mrb[0].mxu0 %v256
      %v317 = vpop.f32.mrb[0].mxu0
      %v318 = vadd.f32 %v244, %v317
      %v319 = vpop.f32.mrb[0].mxu0
      %v320 = vpop.f32.mrb[0].mxu0
      %v321 = vadd.f32 %v244, %v320
      %v322 = vpop.f32.mrb[0].mxu0
      %323 = vmatprep.mubr.bf16.mxu0 0
      %324 = vmatmul.mubr.bf16.gmra.mrb[0].mxu0 %v259
      %v325 = vpop.f32.mrb[0].mxu0
      %v326 = vadd.f32 %v244, %v325
      %v327 = vpop.f32.mrb[0].mxu0
      %v328 = vpop.f32.mrb[0].mxu0
      %v329 = vadd.f32 %v244, %v328
      %v330 = vpop.f32.mrb[0].mxu0
      %331 = vmatprep.mubr.bf16.mxu0 0
      %332 = vmatmul.mubr.bf16.gmra.mrb[0].mxu0 %v262
      %v333 = vpop.f32.mrb[0].mxu0
      %v334 = vadd.f32 %v244, %v333
      %v335 = vpop.f32.mrb[0].mxu0
      %v336 = vpop.f32.mrb[0].mxu0
      %v337 = vadd.f32 %v244, %v336
      %v338 = vpop.f32.mrb[0].mxu0
      %339 = vmatprep.mubr.bf16.mxu0 0
      %340 = vmatmul.mubr.bf16.gmra.mrb[0].mxu0 %v265
      %v341 = vpop.f32.mrb[0].mxu0
      %v342 = vadd.f32 %v244, %v341
      %v343 = vpop.f32.mrb[0].mxu0
      %v344 = vpop.f32.mrb[0].mxu0
      %v345 = vadd.f32 %v244, %v344
      %v346 = vpop.f32.mrb[0].mxu0
      %347 = vmatprep.mubr.bf16.mxu0 0
      %348 = vmatmul.mubr.bf16.gmra.mrb[0].mxu0 %v268
      %v349 = vpop.f32.mrb[0].mxu0
      %v350 = vadd.f32 %v244, %v349
      %v351 = vpop.f32.mrb[0].mxu0
      %v352 = vpop.f32.mrb[0].mxu0
      %v353 = vadd.f32 %v244, %v352
      %v354 = vpop.f32.mrb[0].mxu0
      %355 = vmatprep.mubr.bf16.mxu0 0
      %356 = vmatmul.mubr.bf16.gmra.mrb[0].mxu0 %v271
      %v357 = vpop.f32.mrb[0].mxu0
      %v358 = vadd.f32 %v244, %v357
      %v359 = vpop.f32.mrb[0].mxu0
      %v360 = vpop.f32.mrb[0].mxu0
      %v361 = vadd.f32 %v244, %v360
      %v362 = vpop.f32.mrb[0].mxu0
      %363 = vmatprep.mubr.bf16.mxu0 0
      %364 = vmatmul.mubr.bf16.gmra.mrb[0].mxu0 %v274
      %v365 = vpop.f32.mrb[0].mxu0
      %v366 = vadd.f32 %v244, %v365
      %v367 = vpop.f32.mrb[0].mxu0
      %v368 = vpop.f32.mrb[0].mxu0
      %v369 = vadd.f32 %v244, %v368
      %v370 = vpop.f32.mrb[0].mxu0
      %371 = vmatprep.mubr.bf16.mxu0 0
      %372 = vmatmul.mubr.bf16.gmra.mrb[0].mxu0 %v277
      %v373 = vpop.f32.mrb[0].mxu0
      %v374 = vadd.f32 %v244, %v373
      %v375 = vpop.f32.mrb[0].mxu0
      %v376 = vpop.f32.mrb[0].mxu0
      %v377 = vadd.f32 %v244, %v376
      %v378 = vpop.f32.mrb[0].mxu0
      %379 = vdwg.mxu0
      %v380 = vpack.c.bf16 %v321, %v318
      %v381 = vpack.c.bf16 %v329, %v326
      %v382 = vpack.c.bf16 %v337, %v334
      %v383 = vpack.c.bf16 %v345, %v342
      %v384 = vpack.c.bf16 %v353, %v350
      %v385 = vpack.c.bf16 %v361, %v358
      %v386 = vpack.c.bf16 %v369, %v366
      %v387 = vpack.c.bf16 %v377, %v374
      %v396 = vunpack.c.l.b16 %v380
      %v397 = vunpack.c.h.b16 %v380
      %v398 = vunpack.c.l.b16 %v381
      %v399 = vunpack.c.h.b16 %v381
      %v400 = vunpack.c.l.b16 %v382
      %v401 = vunpack.c.h.b16 %v382
      %v402 = vunpack.c.l.b16 %v383
      %v403 = vunpack.c.h.b16 %v383
      %v404 = vunpack.c.l.b16 %v384
      %v405 = vunpack.c.h.b16 %v384
      %v406 = vunpack.c.l.b16 %v385
      %v407 = vunpack.c.h.b16 %v385
      %v408 = vunpack.c.l.b16 %v386
      %v409 = vunpack.c.h.b16 %v386
      %v410 = vunpack.c.l.b16 %v387
      %v411 = vunpack.c.h.b16 %v387
      %v412 = vpack.c.b16 %v396, %v396
      %v413 = vpack.c.b16 %v397, %v397
      %v414 = vpack.c.b16 %v398, %v398
      %v415 = vpack.c.b16 %v399, %v399
      %v416 = vpack.c.b16 %v400, %v400
      %v417 = vpack.c.b16 %v401, %v401
      %v418 = vpack.c.b16 %v402, %v402
      %v419 = vpack.c.b16 %v403, %v403
      %v420 = vpack.c.b16 %v404, %v404
      %v421 = vpack.c.b16 %v405, %v405
      %v422 = vpack.c.b16 %v406, %v406
      %v423 = vpack.c.b16 %v407, %v407
      %v424 = vpack.c.b16 %v408, %v408
      %v425 = vpack.c.b16 %v409, %v409
      %v426 = vpack.c.b16 %v410, %v410
      %v427 = vpack.c.b16 %v411, %v411
      %vm444 = vcmask 257024
      %445 = vst.msk [vmem:[%s205] sm:$0xf] %vm444, %v412
      %446 = vst.msk [vmem:[%s205 + $0x4] sm:$0xf] %vm444, %v413
      %447 = vst.msk [vmem:[%s205 + $0x8] sm:$0xf] %vm444, %v414
      %448 = vst.msk [vmem:[%s205 + $0xc] sm:$0xf] %vm444, %v415
      %449 = vst.msk [vmem:[%s205 + $0x10] sm:$0xf] %vm444, %v416
      %450 = vst.msk [vmem:[%s205 + $0x14] sm:$0xf] %vm444, %v417
      %451 = vst.msk [vmem:[%s205 + $0x18] sm:$0xf] %vm444, %v418
      %452 = vst.msk [vmem:[%s205 + $0x1c] sm:$0xf] %vm444, %v419
      %453 = vst.msk [vmem:[%s205 + $0x20] sm:$0xf] %vm444, %v420
      %454 = vst.msk [vmem:[%s205 + $0x24] sm:$0xf] %vm444, %v421
      %455 = vst.msk [vmem:[%s205 + $0x28] sm:$0xf] %vm444, %v422
      %456 = vst.msk [vmem:[%s205 + $0x2c] sm:$0xf] %vm444, %v423
      %457 = vst.msk [vmem:[%s205 + $0x30] sm:$0xf] %vm444, %v424
      %458 = vst.msk [vmem:[%s205 + $0x34] sm:$0xf] %vm444, %v425
      %459 = vst.msk [vmem:[%s205 + $0x38] sm:$0xf] %vm444, %v426
      %460 = vst.msk [vmem:[%s205 + $0x3c] sm:$0xf] %vm444, %v427
      %461 = vrot.lane.b32.xlu0 %v412, 96
      %v462 = vpop.permute.xlu0 %461
      %463 = vrot.lane.b32.xlu0 %v413, 96
      %v464 = vpop.permute.xlu0 %463
      %465 = vrot.lane.b32.xlu0 %v414, 96
      %v466 = vpop.permute.xlu0 %465
      %467 = vrot.lane.b32.xlu0 %v415, 96
      %v468 = vpop.permute.xlu0 %467
      %469 = vrot.lane.b32.xlu0 %v416, 96
      %v470 = vpop.permute.xlu0 %469
      %471 = vrot.lane.b32.xlu0 %v417, 96
      %v472 = vpop.permute.xlu0 %471
      %473 = vrot.lane.b32.xlu0 %v418, 96
      %v474 = vpop.permute.xlu0 %473
      %475 = vrot.lane.b32.xlu0 %v419, 96
      %v476 = vpop.permute.xlu0 %475
      %477 = vrot.lane.b32.xlu0 %v420, 96
      %v478 = vpop.permute.xlu0 %477
      %479 = vrot.lane.b32.xlu0 %v421, 96
      %v480 = vpop.permute.xlu0 %479
      %481 = vrot.lane.b32.xlu0 %v422, 96
      %v482 = vpop.permute.xlu0 %481
      %483 = vrot.lane.b32.xlu0 %v423, 96
      %v484 = vpop.permute.xlu0 %483
      %485 = vrot.lane.b32.xlu0 %v424, 96
      %v486 = vpop.permute.xlu0 %485
      %487 = vrot.lane.b32.xlu0 %v425, 96
      %v488 = vpop.permute.xlu0 %487
      %489 = vrot.lane.b32.xlu0 %v426, 96
      %v490 = vpop.permute.xlu0 %489
      %491 = vrot.lane.b32.xlu0 %v427, 96
      %v492 = vpop.permute.xlu0 %491
      %509 = vst.msk [vmem:[%s210] sm:$0xf] %vm444, %v462
      %510 = vst.msk [vmem:[%s210 + $0x4] sm:$0xf] %vm444, %v464
      %511 = vst.msk [vmem:[%s210 + $0x8] sm:$0xf] %vm444, %v466
      %512 = vst.msk [vmem:[%s210 + $0xc] sm:$0xf] %vm444, %v468
      %513 = vst.msk [vmem:[%s210 + $0x10] sm:$0xf] %vm444, %v470
      %514 = vst.msk [vmem:[%s210 + $0x14] sm:$0xf] %vm444, %v472
      %515 = vst.msk [vmem:[%s210 + $0x18] sm:$0xf] %vm444, %v474
      %516 = vst.msk [vmem:[%s210 + $0x1c] sm:$0xf] %vm444, %v476
      %517 = vst.msk [vmem:[%s210 + $0x20] sm:$0xf] %vm444, %v478
      %518 = vst.msk [vmem:[%s210 + $0x24] sm:$0xf] %vm444, %v480
      %519 = vst.msk [vmem:[%s210 + $0x28] sm:$0xf] %vm444, %v482
      %520 = vst.msk [vmem:[%s210 + $0x2c] sm:$0xf] %vm444, %v484
      %521 = vst.msk [vmem:[%s210 + $0x30] sm:$0xf] %vm444, %v486
      %522 = vst.msk [vmem:[%s210 + $0x34] sm:$0xf] %vm444, %v488
      %523 = vst.msk [vmem:[%s210 + $0x38] sm:$0xf] %vm444, %v490
      %524 = vst.msk [vmem:[%s210 + $0x3c] sm:$0xf] %vm444, %v492
      %p525 = scmp.lt.s32.totalorder %s16, 1
      %s526 = scalar_select %p525, %s16, 1
      %s527 = smul.addr %s526, 16
      %s528 = smul.addr %s527, 4
      %s529 = scalar_lea.vmem %s3, %s528
      %p530 = scmp.lt.s32.totalorder %s16, 1
      %s531 = scalar_select %p530, %s16, 1
      %s532 = smul.addr %s531, 16
      %s533 = smul.addr %s532, 4
      %s534 = scalar_lea.vmem %s4, %s533
      // Predicated region
      $region33: #{tpu_custom_call.1} parent=31 // pred_check
        %p535 = pneg %p102
      $region34: #{tpu_custom_call.1} parent=31 // pred_check_branch
        %537 = sbr.rel (%p535) target = $region36
      $region35: #{tpu_custom_call.1} parent=31 // pred_region
        _
      $region36: #{tpu_custom_call.1} parent=31 // pred_fallthru
        _
      // Predicated region
      $region37: #{tpu_custom_call.1} parent=31 // pred_check
        %p538 = pneg %p128
      $region38: #{tpu_custom_call.1} parent=31 // pred_check_branch
        %540 = sbr.rel (%p538) target = $region40
      $region39: #{tpu_custom_call.1} parent=31 // pred_region
        _
      $region40: #{tpu_custom_call.1} parent=31 // pred_fallthru
        _
    $region32: #{tpu_custom_call.1} parent=5 // pred_fallthru
      _
    %p541 = scmp.le.s32.totalorder 2, %s11
    // Predicated region
    $region41: #{tpu_custom_call.1} parent=5 // pred_check
      %p542 = pneg %p541
    $region42: #{tpu_custom_call.1} parent=5 // pred_check_branch
      %544 = sbr.rel (%p542) target = $region44
    $region43: #{tpu_custom_call.1} parent=5 // pred_region
      %s545 = ssub.s32 %s11, 2
      // Predicated region
      $region45: #{tpu_custom_call.1} parent=43 // pred_check
        %p546 = pneg %p108
      $region46: #{tpu_custom_call.1} parent=43 // pred_check_branch
        %548 = sbr.rel (%p546) target = $region48
      $region47: #{tpu_custom_call.1} parent=43 // pred_region
        %p549 = scmp.lt.s32.totalorder %s17, 1
        %s550 = scalar_select %p549, %s17, 1
        %s551 = smul.addr %s550, 16
        %s552 = smul.addr %s551, 4
        %s553 = scalar_lea.vmem %s3, %s552
      $region48: #{tpu_custom_call.1} parent=43 // pred_fallthru
        _
      // Predicated region
      $region49: #{tpu_custom_call.1} parent=43 // pred_check
        %p554 = pneg %p134
      $region50: #{tpu_custom_call.1} parent=43 // pred_check_branch
        %556 = sbr.rel (%p554) target = $region52
      $region51: #{tpu_custom_call.1} parent=43 // pred_region
        %p557 = scmp.lt.s32.totalorder %s17, 1
        %s558 = scalar_select %p557, %s17, 1
        %s559 = smul.addr %s558, 16
        %s560 = smul.addr %s559, 4
        %s561 = scalar_lea.vmem %s4, %s560
      $region52: #{tpu_custom_call.1} parent=43 // pred_fallthru
        _
    $region44: #{tpu_custom_call.1} parent=5 // pred_fallthru
      _
  $region6: #{tpu_custom_call.1} parent=0 // loop_footer
    %s15 = sadd.s32 1, %s11
  $region7: #{tpu_custom_call.1} parent=0 // loop_footer_branch
    %10 = sbr.rel target = $region3
  $region8: #{tpu_custom_call.1} parent=0 // loop_exit
    _

</llo_original>
